<compile_context>
chip_gen: v6e
topology: v6e:2x2x1
jax: 0.10.0
libtpu: 0.0.40
codegen_flags: <defaults>
</compile_context>

<pallas_src>
import functools

import jax
import jax.numpy as jnp
from jax.experimental import pallas as pl
from jax.experimental.pallas import tpu as pltpu


def _round_up(n, m):
    return (n + m - 1) // m * m


def _dqn_kernel(x_ref, w1_ref, b1_ref, w2_ref, b2_ref, w3t_ref, b3t_ref, o_ref):
    # One batch tile per grid step.  All three layers are fused so the
    # (tb, 128) intermediates never leave VMEM.  Matmul operands are bf16
    # (full MXU rate), accumulation / bias / ReLU run in f32 on the VPU.
    x = x_ref[...]                                                     # (tb, S) bf16

    h1 = jnp.dot(x, w1_ref[...], preferred_element_type=jnp.float32) + b1_ref[...]
    h1 = jnp.maximum(h1, 0.0).astype(jnp.bfloat16)                     # (tb, H)

    h2 = jnp.dot(h1, w2_ref[...], preferred_element_type=jnp.float32) + b2_ref[...]
    h2 = jnp.maximum(h2, 0.0).astype(jnp.bfloat16)                     # (tb, H)

    # Last layer computed transposed: (A_pad, H) x (tb, H)^T -> (A_pad, tb).
    # Batch lands on the lane dim, so the output store is a dense, contiguous
    # strip of tb*4 bytes per action row (no 2/128 masked stores).
    qt = jax.lax.dot_general(
        w3t_ref[...], h2,
        dimension_numbers=(((1,), (1,)), ((), ())),
        preferred_element_type=jnp.float32)                            # (A_pad, tb)
    qt = qt + b3t_ref[...]                                             # + (A_pad, 1)

    a = o_ref.shape[0]                   # true action count; padded rows dropped
    o_ref[...] = qt[:a, :].astype(o_ref.dtype)


@functools.partial(jax.jit, static_argnames=("block_b",))
def dqn_forward(x, params, block_b=2048):
    """Forward pass of the DQN.

    Args:
      x: (B, state_size) float32 environment states.
      params: dict with w1 (S,128), b1 (1,128), w2 (128,128), b2 (1,128),
              w3 (128,A), b3 (1,A)  -- weights stored as (in, out), float32.
      block_b: requested batch tile (static).  Rounded to a multiple of 128
               inside; 2048 amortizes the ~0.35us per-grid-step overhead and
               fits comfortably in VMEM on v5e/v6e/v7x with bf16 operands.
    Returns:
      (B, action_size) float32 Q-values.
    """
    B, S = x.shape
    H = params["w1"].shape[1]            # 128
    A = params["w3"].shape[1]
    ap = max(_round_up(A, 8), 8)         # sublane-align transposed W3 rows

    # Batch tile: multiple of 128 (lane-dense transposed output) or == B.
    if B < 256:
        tb = B                           # single block == full array dims (legal)
    else:
        tb = min(_round_up(block_b, 128),
                 _round_up(pl.cdiv(B, 2), 128))   # >=2 tiles for v7x megacore
        tb = max(tb, 128)
    grid = (pl.cdiv(B, tb),)

    bf16, f32 = jnp.bfloat16, jnp.float32
    x_bf = x.astype(bf16)
    w1 = params["w1"].astype(bf16)                                     # (S, H)
    b1 = params["b1"].astype(f32)                                      # (1, H)
    w2 = params["w2"].astype(bf16)                                     # (H, H)
    b2 = params["b2"].astype(f32)                                      # (1, H)
    w3t = jnp.pad(params["w3"].T, ((0, ap - A), (0, 0))).astype(bf16)  # (ap, H)
    b3t = jnp.pad(params["b3"].reshape(A, 1), ((0, ap - A), (0, 0))).astype(f32)

    flops = 2 * B * (S * H + H * H + H * ap)
    bytes_accessed = (2 * (B * S + S * H + H * H + ap * H)   # bf16 x + weights
                      + 4 * (2 * H + ap + A * B))            # f32 biases + q out

    # TODO(synk): mark the six grid-invariant weight/bias specs with
    # pipeline_mode=pl.Buffered(1) (their second pipeline buffer is dead
    # weight) once single-buffer pipeline_mode is reliably supported.
    qt = pl.pallas_call(
        _dqn_kernel,
        out_shape=jax.ShapeDtypeStruct((A, B), jnp.float32),
        grid=grid,
        in_specs=[
            pl.BlockSpec((tb, S), lambda i: (i, 0)),      # x: batch-tiled
            pl.BlockSpec((S, H), lambda i: (0, 0)),       # w1: VMEM-resident
            pl.BlockSpec((1, H), lambda i: (0, 0)),       # b1
            pl.BlockSpec((H, H), lambda i: (0, 0)),       # w2
            pl.BlockSpec((1, H), lambda i: (0, 0)),       # b2
            pl.BlockSpec((ap, H), lambda i: (0, 0)),      # w3^T (A padded to 8)
            pl.BlockSpec((ap, 1), lambda i: (0, 0)),      # b3^T
        ],
        out_specs=pl.BlockSpec((A, tb), lambda i: (0, i)),
        compiler_params=pltpu.CompilerParams(
            dimension_semantics=("parallel",)),
        cost_estimate=pl.CostEstimate(
            flops=flops, transcendentals=0, bytes_accessed=bytes_accessed),
    )(x_bf, w1, b1, w2, b2, w3t, b3t)

    # (A, B) -> (B, A): tiny transpose over the true-size Q matrix only.
    return qt.T


def init_dqn_params(key, state_size, action_size, hidden=128):
    """Deterministic init mimicking nn.Linear default: U(-1/sqrt(fan_in), +)."""
    ks = jax.random.split(key, 6)

    def linear(kw, kb, fan_in, fan_out):
        bound = 1.0 / jnp.sqrt(fan_in)
        # Stored as (in, out): kernel computes x @ W + b.
        w = jax.random.uniform(kw, (fan_in, fan_out), jnp.float32, -bound, bound)
        b = jax.random.uniform(kb, (1, fan_out), jnp.float32, -bound, bound)
        return w, b

    w1, b1 = linear(ks[0], ks[1], state_size, hidden)
    w2, b2 = linear(ks[2], ks[3], hidden, hidden)
    w3, b3 = linear(ks[4], ks[5], hidden, action_size)
    return {"w1": w1, "b1": b1, "w2": w2, "b2": b2, "w3": w3, "b3": b3}


def _reference_forward(x, p):
    h1 = jnp.maximum(x @ p["w1"] + p["b1"], 0.0)
    h2 = jnp.maximum(h1 @ p["w2"] + p["b2"], 0.0)
    return h2 @ p["w3"] + p["b3"]


if __name__ == "__main__":
    # CartPole-like sizes: state_size=4, action_size=2, small batch of states.
    batch, state_size, action_size = 8, 4, 2

    key = jax.random.PRNGKey(0)
    k_params, k_x = jax.random.split(key)

    params = init_dqn_params(k_params, state_size, action_size)
    x = jax.random.normal(k_x, (batch, state_size), dtype=jnp.float32)

    q_values = dqn_forward(x, params)
    q_values = jax.block_until_ready(q_values)

    # Sanity-check against the plain-JAX f32 reference.  Operands are bf16 in
    # the kernel (f32 accumulation), so use a ~1e-2-scale tolerance.
    ref = _reference_forward(x, params)
    assert q_values.shape == (batch, action_size)
    assert jnp.allclose(q_values, ref, atol=3e-2, rtol=3e-2)

    # Also exercise the batch-tiled path (2 grid tiles, ragged last block).
    k_big = jax.random.PRNGKey(1)
    x_big = jax.random.normal(k_big, (1300, state_size), dtype=jnp.float32)
    q_big = jax.block_until_ready(dqn_forward(x_big, params))
    ref_big = _reference_forward(x_big, params)
    assert q_big.shape == (1300, action_size)
    assert jnp.allclose(q_big, ref_big, atol=3e-2, rtol=3e-2)

    print("KERNEL_OK")
</pallas_src>

<mosaic_0001>
module attributes {stable_mosaic.version = 11 : i64} {
  func.func @_dqn_kernel(%arg0: i32, %arg1: memref<8x4xbf16, #tpu.memory_space<vmem>>, %arg2: memref<4x128xbf16, #tpu.memory_space<vmem>>, %arg3: memref<1x128xf32, #tpu.memory_space<vmem>>, %arg4: memref<128x128xbf16, #tpu.memory_space<vmem>>, %arg5: memref<1x128xf32, #tpu.memory_space<vmem>>, %arg6: memref<8x128xbf16, #tpu.memory_space<vmem>>, %arg7: memref<8x1xf32, #tpu.memory_space<vmem>>, %arg8: memref<2x8xf32, #tpu.memory_space<vmem>>) attributes {dimension_semantics = [#tpu.dimension_semantics<parallel>], iteration_bounds = array<i64: 1>, scalar_prefetch = 0 : i64, scratch_operands = 0 : i64, tpu.core_type = #tpu.core_type<tc>, window_params = [{transform_indices = @transform_0, window_bounds = array<i64: 8, 4>}, {pipeline_mode = #tpu.pipeline_mode<synchronous>, transform_indices = @transform_1, window_bounds = array<i64: 4, 128>}, {pipeline_mode = #tpu.pipeline_mode<synchronous>, transform_indices = @transform_2, window_bounds = array<i64: 1, 128>}, {pipeline_mode = #tpu.pipeline_mode<synchronous>, transform_indices = @transform_3, window_bounds = array<i64: 128, 128>}, {pipeline_mode = #tpu.pipeline_mode<synchronous>, transform_indices = @transform_4, window_bounds = array<i64: 1, 128>}, {pipeline_mode = #tpu.pipeline_mode<synchronous>, transform_indices = @transform_5, window_bounds = array<i64: 8, 128>}, {pipeline_mode = #tpu.pipeline_mode<synchronous>, transform_indices = @transform_6, window_bounds = array<i64: 8, 1>}, {transform_indices = @transform_7, window_bounds = array<i64: 2, 8>}]} {
    %c0 = arith.constant 0 : index
    %c0_0 = arith.constant 0 : index
    %0 = vector.load %arg1[%c0, %c0_0] : memref<8x4xbf16, #tpu.memory_space<vmem>>, vector<8x4xbf16>
    %c0_1 = arith.constant 0 : index
    %c0_2 = arith.constant 0 : index
    %1 = vector.load %arg2[%c0_1, %c0_2] : memref<4x128xbf16, #tpu.memory_space<vmem>>, vector<4x128xbf16>
    %cst = arith.constant dense<0.000000e+00> : vector<8x128xf32>
    %2 = tpu.matmul %0, %1, %cst {dimension_numbers = #tpu.dot_dimension_numbers<[1], [0], [0], [1], [0, 0, 1, 1], [], []>} : vector<8x4xbf16>, vector<4x128xbf16>, vector<8x128xf32> -> vector<8x128xf32>
    %c0_3 = arith.constant 0 : index
    %c0_4 = arith.constant 0 : index
    %3 = vector.load %arg3[%c0_3, %c0_4] : memref<1x128xf32, #tpu.memory_space<vmem>>, vector<1x128xf32>
    %4 = vector.broadcast %3 : vector<1x128xf32> to vector<8x128xf32>
    %5 = arith.addf %2, %4 : vector<8x128xf32>
    %cst_5 = arith.constant 0.000000e+00 : f32
    %6 = vector.broadcast %cst_5 : f32 to vector<8x128xf32>
    %7 = arith.maximumf %5, %6 : vector<8x128xf32>
    %8 = arith.truncf %7 : vector<8x128xf32> to vector<8x128xbf16>
    %c0_6 = arith.constant 0 : index
    %c0_7 = arith.constant 0 : index
    %9 = vector.load %arg4[%c0_6, %c0_7] : memref<128x128xbf16, #tpu.memory_space<vmem>>, vector<128x128xbf16>
    %cst_8 = arith.constant dense<0.000000e+00> : vector<8x128xf32>
    %10 = tpu.matmul %8, %9, %cst_8 {dimension_numbers = #tpu.dot_dimension_numbers<[1], [0], [0], [1], [0, 0, 1, 1], [], []>} : vector<8x128xbf16>, vector<128x128xbf16>, vector<8x128xf32> -> vector<8x128xf32>
    %c0_9 = arith.constant 0 : index
    %c0_10 = arith.constant 0 : index
    %11 = vector.load %arg5[%c0_9, %c0_10] : memref<1x128xf32, #tpu.memory_space<vmem>>, vector<1x128xf32>
    %12 = vector.broadcast %11 : vector<1x128xf32> to vector<8x128xf32>
    %13 = arith.addf %10, %12 : vector<8x128xf32>
    %cst_11 = arith.constant 0.000000e+00 : f32
    %14 = vector.broadcast %cst_11 : f32 to vector<8x128xf32>
    %15 = arith.maximumf %13, %14 : vector<8x128xf32>
    %16 = arith.truncf %15 : vector<8x128xf32> to vector<8x128xbf16>
    %c0_12 = arith.constant 0 : index
    %c0_13 = arith.constant 0 : index
    %17 = vector.load %arg6[%c0_12, %c0_13] : memref<8x128xbf16, #tpu.memory_space<vmem>>, vector<8x128xbf16>
    %cst_14 = arith.constant dense<0.000000e+00> : vector<8x8xf32>
    %18 = tpu.matmul %17, %16, %cst_14 {dimension_numbers = #tpu.dot_dimension_numbers<[1], [1], [0], [0], [0, 0, 1, 0], [], []>} : vector<8x128xbf16>, vector<8x128xbf16>, vector<8x8xf32> -> vector<8x8xf32>
    %c0_15 = arith.constant 0 : index
    %c0_16 = arith.constant 0 : index
    %19 = vector.load %arg7[%c0_15, %c0_16] : memref<8x1xf32, #tpu.memory_space<vmem>>, vector<8x1xf32>
    %20 = vector.broadcast %19 : vector<8x1xf32> to vector<8x8xf32>
    %21 = arith.addf %18, %20 : vector<8x8xf32>
    %22 = vector.extract_strided_slice %21 {offsets = [0, 0], sizes = [2, 8], strides = [1, 1]} : vector<8x8xf32> to vector<2x8xf32>
    %c0_17 = arith.constant 0 : index
    %c0_18 = arith.constant 0 : index
    %23 = vector.load %arg8[%c0_17, %c0_18] : memref<2x8xf32, #tpu.memory_space<vmem>>, vector<2x8xf32>
    tpu.vector_store %arg8[%c0_17, %c0_18], %22 {strides = array<i32>} : memref<2x8xf32, #tpu.memory_space<vmem>>, vector<2x8xf32>,
    return
  }
  func.func @transform_0(%arg0: i32) -> (i32, i32) {
    %c0_i32 = arith.constant 0 : i32
    %c0_i32_0 = arith.constant 0 : i32
    return %arg0, %c0_i32 : i32, i32
  }
  func.func @transform_1(%arg0: i32) -> (i32, i32) {
    %c0_i32 = arith.constant 0 : i32
    %c0_i32_0 = arith.constant 0 : i32
    %c0_i32_1 = arith.constant 0 : i32
    return %c0_i32, %c0_i32_0 : i32, i32
  }
  func.func @transform_2(%arg0: i32) -> (i32, i32) {
    %c0_i32 = arith.constant 0 : i32
    %c0_i32_0 = arith.constant 0 : i32
    %c0_i32_1 = arith.constant 0 : i32
    return %c0_i32, %c0_i32_0 : i32, i32
  }
  func.func @transform_3(%arg0: i32) -> (i32, i32) {
    %c0_i32 = arith.constant 0 : i32
    %c0_i32_0 = arith.constant 0 : i32
    %c0_i32_1 = arith.constant 0 : i32
    return %c0_i32, %c0_i32_0 : i32, i32
  }
  func.func @transform_4(%arg0: i32) -> (i32, i32) {
    %c0_i32 = arith.constant 0 : i32
    %c0_i32_0 = arith.constant 0 : i32
    %c0_i32_1 = arith.constant 0 : i32
    return %c0_i32, %c0_i32_0 : i32, i32
  }
  func.func @transform_5(%arg0: i32) -> (i32, i32) {
    %c0_i32 = arith.constant 0 : i32
    %c0_i32_0 = arith.constant 0 : i32
    %c0_i32_1 = arith.constant 0 : i32
    return %c0_i32, %c0_i32_0 : i32, i32
  }
  func.func @transform_6(%arg0: i32) -> (i32, i32) {
    %c0_i32 = arith.constant 0 : i32
    %c0_i32_0 = arith.constant 0 : i32
    %c0_i32_1 = arith.constant 0 : i32
    return %c0_i32, %c0_i32_0 : i32, i32
  }
  func.func @transform_7(%arg0: i32) -> (i32, i32) {
    %c0_i32 = arith.constant 0 : i32
    %c0_i32_0 = arith.constant 0 : i32
    return %c0_i32, %arg0 : i32, i32
  }
}

</mosaic_0001>

<llo_original>
// kernel: dqn_forward.1
$region0: #{dqn_forward.1}
  #allocation0 [shape = 'u32[]', space=smem, size = 0x4, offset = 0x4, fixed_abs, tag = 'smem constant byte address 0x4 - core index']
  #allocation1 [shape = 'u32[144,128]{1,0:T(1,128)}', space=vmem, size = 0x12000, scoped, tag = 'internal scratch']
  %s0 = inlined_call_operand.vmem [shape: bf16[8,4], index: 0, kind: input, shape index: {}]
  %s1 = inlined_call_operand.vmem [shape: bf16[4,128], index: 1, kind: input, shape index: {}]
  %s2 = inlined_call_operand.vmem [shape: f32[1,128], index: 2, kind: input, shape index: {}]
  %s3 = inlined_call_operand.vmem [shape: bf16[128,128], index: 3, kind: input, shape index: {}]
  %s4 = inlined_call_operand.vmem [shape: f32[1,128], index: 4, kind: input, shape index: {}]
  %s5 = inlined_call_operand.vmem [shape: bf16[8,128], index: 5, kind: input, shape index: {}]
  %s6 = inlined_call_operand.vmem [shape: f32[8,1], index: 6, kind: input, shape index: {}]
  %s7 = inlined_call_operand.hbm [shape: f32[2,8], index: 7, kind: output, shape index: {}]
  %s8 = sld [smem:[#allocation0]]
  $region38: #{dqn_forward.1} parent=0
    _
  %s10 = ssub.s32 1, %s8
  %s11 = scalar_select 0, %s10, %s8
  $region1: #{dqn_forward.1} parent=0
    #allocation2 [shape = 'u8[1024]{0}', space=vmem, size = 0x400, scoped, tag = 'output window, operand 0, single buffered']
    #allocation3 [shape = 's32[1]{0}', space=sflag, size = 0x4, scoped, tag = 'scoped memory for dqn_forward.1']
    %12 = vsyncpa [#allocation3], 0
    // Predicated region
    $region2: #{dqn_forward.1} parent=1 // pred_check
      _
    $region3: #{dqn_forward.1} parent=1 // pred_check_branch
      %14 = sbr.rel (0) target = $region5
    $region4: #{dqn_forward.1} parent=1 // pred_region
      _
    $region5: #{dqn_forward.1} parent=1 // pred_fallthru
      _
    // Predicated region
    $region6: #{dqn_forward.1} parent=1 // pred_check
      _
    $region7: #{dqn_forward.1} parent=1 // pred_check_branch
      %16 = sbr.rel (0) target = $region9
    $region8: #{dqn_forward.1} parent=1 // pred_region
      _
    $region9: #{dqn_forward.1} parent=1 // pred_fallthru
      _
    // Predicated region
    $region10: #{dqn_forward.1} parent=1 // pred_check
      _
    $region11: #{dqn_forward.1} parent=1 // pred_check_branch
      %18 = sbr.rel (0) target = $region13
    $region12: #{dqn_forward.1} parent=1 // pred_region
      _
    $region13: #{dqn_forward.1} parent=1 // pred_fallthru
      _
    // Predicated region
    $region14: #{dqn_forward.1} parent=1 // pred_check
      _
    $region15: #{dqn_forward.1} parent=1 // pred_check_branch
      %20 = sbr.rel (0) target = $region17
    $region16: #{dqn_forward.1} parent=1 // pred_region
      _
    $region17: #{dqn_forward.1} parent=1 // pred_fallthru
      _
    // Predicated region
    $region18: #{dqn_forward.1} parent=1 // pred_check
      _
    $region19: #{dqn_forward.1} parent=1 // pred_check_branch
      %22 = sbr.rel (0) target = $region21
    $region20: #{dqn_forward.1} parent=1 // pred_region
      _
    $region21: #{dqn_forward.1} parent=1 // pred_fallthru
      _
    // Predicated region
    $region22: #{dqn_forward.1} parent=1 // pred_check
      _
    $region23: #{dqn_forward.1} parent=1 // pred_check_branch
      %24 = sbr.rel (0) target = $region25
    $region24: #{dqn_forward.1} parent=1 // pred_region
      _
    $region25: #{dqn_forward.1} parent=1 // pred_fallthru
      _
    // Predicated region
    $region26: #{dqn_forward.1} parent=1 // pred_check
      _
    $region27: #{dqn_forward.1} parent=1 // pred_check_branch
      %26 = sbr.rel (0) target = $region29
    $region28: #{dqn_forward.1} parent=1 // pred_region
      _
    $region29: #{dqn_forward.1} parent=1 // pred_fallthru
      _
    %v28 = vld [vmem:[%s0] sm:$0xf]
    %v29 = vld [vmem:[%s1] sm:$0x3]
    %v30 = vld [vmem:[%s2] sm:$0x1]
    %v32 = vlaneseq
    %v33 = vshrl.u32 %v32, 7
    %v34 = vsub.s32 0, %v33
    %v35 = vrot.slane %v30, %v34
    %vm37 = vcmask 31744
    %v39 = vsel %vm37, %v28, 0
    %vm41 = vcmask 1041408
    %v43 = vsel %vm41, %v29, 0
    %45 = vmatprep.subr.bf16.mxu0 0
    %46 = vmatpush1.bf16.msra.mxu0 0
    %47 = vmatprep.subr.bf16.mxu0 0
    %48 = vmatpush1.bf16.msra.mxu0 0
    %49 = vmatprep.subr.bf16.mxu0 0
    %50 = vmatpush1.bf16.msra.mxu0 0
    %51 = vmatprep.subr.bf16.mxu0 0
    %52 = vmatpush1.bf16.msra.mxu0 0
    %53 = vmatprep.subr.bf16.mxu0 0
    %54 = vmatpush1.bf16.msra.mxu0 0
    %55 = vmatprep.subr.bf16.mxu0 0
    %56 = vmatpush1.bf16.msra.mxu0 0
    %57 = vmatprep.subr.bf16.mxu0 0
    %58 = vmatpush1.bf16.msra.mxu0 0
    %59 = vmatprep.subr.bf16.mxu0 0
    %60 = vmatpush1.bf16.msra.mxu0 %v43
    %61 = vmatprep.subr.bf16.mxu0 0
    %62 = vmatpush2.bf16.msra.mxu0 0
    %63 = vmatprep.subr.bf16.mxu0 0
    %64 = vmatpush2.bf16.msra.mxu0 0
    %65 = vmatprep.subr.bf16.mxu0 0
    %66 = vmatpush2.bf16.msra.mxu0 0
    %67 = vmatprep.subr.bf16.mxu0 0
    %68 = vmatpush2.bf16.msra.mxu0 0
    %69 = vmatprep.subr.bf16.mxu0 0
    %70 = vmatpush2.bf16.msra.mxu0 0
    %71 = vmatprep.subr.bf16.mxu0 0
    %72 = vmatpush2.bf16.msra.mxu0 0
    %73 = vmatprep.subr.bf16.mxu0 0
    %74 = vmatpush2.bf16.msra.mxu0 0
    %75 = vmatprep.subr.bf16.mxu0 0
    %76 = vmatpush2.bf16.msra.mxu0 0
    %77 = vmatprep.mubr.bf16.mxu0 0
    %78 = vmatmul.mubr.bf16.gmra.mxu0 %v39
    %v79 = vpop.f32.mrf.mxu0
    %v80 = vadd.f32 %v35, %v79
    %v81 = vpop.f32.mrf.mxu0
    %v82 = vpop.f32.mrf.mxu0
    %v83 = vpop.f32.mrf.mxu0
    %84 = vdwg.mxu0
    %v85 = vmax.f32 %v80, 0.0
    %v86 = vpack.c.bf16 %v85, %v85
    %v87 = vld [vmem:[%s3] sm:$0xf]
    %v88 = vld [vmem:[%s3 + $0x4] sm:$0xf]
    %v89 = vld [vmem:[%s3 + $0x8] sm:$0xf]
    %v90 = vld [vmem:[%s3 + $0xc] sm:$0xf]
    %v91 = vld [vmem:[%s3 + $0x10] sm:$0xf]
    %v92 = vld [vmem:[%s3 + $0x14] sm:$0xf]
    %v93 = vld [vmem:[%s3 + $0x18] sm:$0xf]
    %v94 = vld [vmem:[%s3 + $0x1c] sm:$0xf]
    %v95 = vld [vmem:[%s3 + $0x20] sm:$0xf]
    %v96 = vld [vmem:[%s3 + $0x24] sm:$0xf]
    %v97 = vld [vmem:[%s3 + $0x28] sm:$0xf]
    %v98 = vld [vmem:[%s3 + $0x2c] sm:$0xf]
    %v99 = vld [vmem:[%s3 + $0x30] sm:$0xf]
    %v100 = vld [vmem:[%s3 + $0x34] sm:$0xf]
    %v101 = vld [vmem:[%s3 + $0x38] sm:$0xf]
    %v102 = vld [vmem:[%s3 + $0x3c] sm:$0xf]
    %v103 = vld [vmem:[%s4] sm:$0x1]
    %v105 = vlaneseq
    %v106 = vshrl.u32 %v105, 7
    %v107 = vsub.s32 0, %v106
    %v108 = vrot.slane %v103, %v107
    %v126 = vunpack.c.l.b16 %v87
    %v127 = vunpack.c.l.b16 %v88
    %v128 = vunpack.c.l.b16 %v89
    %v129 = vunpack.c.l.b16 %v90
    %v130 = vunpack.c.l.b16 %v91
    %v131 = vunpack.c.l.b16 %v92
    %v132 = vunpack.c.l.b16 %v93
    %v133 = vunpack.c.l.b16 %v94
    %v134 = vunpack.c.l.b16 %v95
    %v135 = vunpack.c.l.b16 %v96
    %v136 = vunpack.c.l.b16 %v97
    %v137 = vunpack.c.l.b16 %v98
    %v138 = vunpack.c.l.b16 %v99
    %v139 = vunpack.c.l.b16 %v100
    %v140 = vunpack.c.l.b16 %v101
    %v141 = vunpack.c.l.b16 %v102
    %v142 = vpack.c.b16 %v127, %v126
    %v143 = vpack.c.b16 %v129, %v128
    %v144 = vpack.c.b16 %v131, %v130
    %v145 = vpack.c.b16 %v133, %v132
    %v146 = vpack.c.b16 %v135, %v134
    %v147 = vpack.c.b16 %v137, %v136
    %v148 = vpack.c.b16 %v139, %v138
    %v149 = vpack.c.b16 %v141, %v140
    %158 = vmatprep.subr.bf16.mxu0 0
    %159 = vmatpush1.bf16.msra.mxu0 %v149
    %160 = vmatprep.subr.bf16.mxu0 0
    %161 = vmatpush1.bf16.msra.mxu0 %v148
    %162 = vmatprep.subr.bf16.mxu0 0
    %163 = vmatpush1.bf16.msra.mxu0 %v147
    %164 = vmatprep.subr.bf16.mxu0 0
    %165 = vmatpush1.bf16.msra.mxu0 %v146
    %166 = vmatprep.subr.bf16.mxu0 0
    %167 = vmatpush1.bf16.msra.mxu0 %v145
    %168 = vmatprep.subr.bf16.mxu0 0
    %169 = vmatpush1.bf16.msra.mxu0 %v144
    %170 = vmatprep.subr.bf16.mxu0 0
    %171 = vmatpush1.bf16.msra.mxu0 %v143
    %172 = vmatprep.subr.bf16.mxu0 0
    %173 = vmatpush1.bf16.msra.mxu0 %v142
    %174 = vmatprep.subr.bf16.mxu0 0
    %175 = vmatpush2.bf16.msra.mxu0 0
    %176 = vmatprep.subr.bf16.mxu0 0
    %177 = vmatpush2.bf16.msra.mxu0 0
    %178 = vmatprep.subr.bf16.mxu0 0
    %179 = vmatpush2.bf16.msra.mxu0 0
    %180 = vmatprep.subr.bf16.mxu0 0
    %181 = vmatpush2.bf16.msra.mxu0 0
    %182 = vmatprep.subr.bf16.mxu0 0
    %183 = vmatpush2.bf16.msra.mxu0 0
    %184 = vmatprep.subr.bf16.mxu0 0
    %185 = vmatpush2.bf16.msra.mxu0 0
    %186 = vmatprep.subr.bf16.mxu0 0
    %187 = vmatpush2.bf16.msra.mxu0 0
    %188 = vmatprep.subr.bf16.mxu0 0
    %189 = vmatpush2.bf16.msra.mxu0 0
    %190 = vmatprep.mubr.bf16.mxu0 0
    %191 = vmatmul.mubr.bf16.gmra.mxu0 %v86
    %v192 = vpop.f32.mrf.mxu0
    %v193 = vadd.f32 %v108, %v192
    %v194 = vpop.f32.mrf.mxu0
    %v195 = vpop.f32.mrf.mxu0
    %v196 = vpop.f32.mrf.mxu0
    %197 = vdwg.mxu0
    %v198 = vmax.f32 %v193, 0.0
    %v199 = vpack.c.bf16 %v198, %v198
    %v200 = vld [vmem:[%s5] sm:$0xf]
    %v201 = vld [vmem:[%s6] sm:$0xff]
    %203 = vset.pattern.permute.xlu0 0
    %204 = vperm.xlu0 %203, %v201
    %v205 = vpop.permute.xlu0 %204
    %207 = vmatprep.subr.bf16.mxu0 0
    %208 = vmatpush1.bf16.xpose.msra.mxu0 0
    %209 = vmatprep.subr.bf16.mxu0 0
    %210 = vmatpush1.bf16.xpose.msra.mxu0 0
    %211 = vmatprep.subr.bf16.mxu0 0
    %212 = vmatpush1.bf16.xpose.msra.mxu0 0
    %213 = vmatprep.subr.bf16.mxu0 0
    %214 = vmatpush1.bf16.xpose.msra.mxu0 0
    %215 = vmatprep.subr.bf16.mxu0 0
    %216 = vmatpush1.bf16.xpose.msra.mxu0 0
    %217 = vmatprep.subr.bf16.mxu0 0
    %218 = vmatpush1.bf16.xpose.msra.mxu0 0
    %219 = vmatprep.subr.bf16.mxu0 0
    %220 = vmatpush1.bf16.xpose.msra.mxu0 0
    %221 = vmatprep.subr.bf16.mxu0 0
    %222 = vmatpush1.bf16.xpose.msra.mxu0 %v199
    %223 = vmatprep.subr.bf16.mxu0 0
    %224 = vmatpush2.bf16.xpose.msra.mxu0 0
    %225 = vmatprep.subr.bf16.mxu0 0
    %226 = vmatpush2.bf16.xpose.msra.mxu0 0
    %227 = vmatprep.subr.bf16.mxu0 0
    %228 = vmatpush2.bf16.xpose.msra.mxu0 0
    %229 = vmatprep.subr.bf16.mxu0 0
    %230 = vmatpush2.bf16.xpose.msra.mxu0 0
    %231 = vmatprep.subr.bf16.mxu0 0
    %232 = vmatpush2.bf16.xpose.msra.mxu0 0
    %233 = vmatprep.subr.bf16.mxu0 0
    %234 = vmatpush2.bf16.xpose.msra.mxu0 0
    %235 = vmatprep.subr.bf16.mxu0 0
    %236 = vmatpush2.bf16.xpose.msra.mxu0 0
    %237 = vmatprep.subr.bf16.mxu0 0
    %238 = vmatpush2.bf16.xpose.msra.mxu0 0
    %239 = vmatprep.mubr.bf16.mxu0 0
    %240 = vmatmul.mubr.bf16.gmra.mxu0 %v200
    %v241 = vpop.f32.mrf.mxu0
    %v242 = vadd.f32 %v205, %v241
    %v243 = vpop.f32.mrf.mxu0
    %v244 = vpop.f32.mrf.mxu0
    %v245 = vpop.f32.mrf.mxu0
    %246 = vdwg.mxu0
    %vm247 = vcmask 58368
    %248 = vst.msk [vmem:[#allocation2] sm:$0x3] %vm247, %v242
    // Predicated region
    $region30: #{dqn_forward.1} parent=1 // pred_check
      _
    $region31: #{dqn_forward.1} parent=1 // pred_check_branch
      %250 = sbr.rel (0) target = $region33
    $region32: #{dqn_forward.1} parent=1 // pred_region
      %s252 = ssub.s32 32, 32
      %253 = vsyncadd [#allocation3], %s252
      %s255 = sshll.u32 [#allocation2], 4
      %s256 = int_to_ptr.vmem [resolvable:$true] %s255
      %258 = dma.vmem_to_hbm [thread:$0]  %s256, 32, %s7, [#allocation3]
    $region33: #{dqn_forward.1} parent=1 // pred_fallthru
      _
    // Predicated region
    $region34: #{dqn_forward.1} parent=1 // pred_check
      _
    $region35: #{dqn_forward.1} parent=1 // pred_check_branch
      %260 = sbr.rel (0) target = $region37
    $region36: #{dqn_forward.1} parent=1 // pred_region
      %261 = dma.done [#allocation3], 32
    $region37: #{dqn_forward.1} parent=1 // pred_fallthru
      _
    %262 = vsyncpa [#allocation3], 1

</llo_original>
